<compile_context>
chip_gen: v5e
topology: v5e:2x2
jax: 0.10.0
libtpu: 0.0.40
codegen_flags: <defaults>
</compile_context>

<pallas_src>
import functools

import jax
import jax.numpy as jnp
from jax import lax
from jax.experimental import pallas as pl
from jax.experimental.pallas import tpu as pltpu


def gpnet_kernel(xt_ref, w1_ref, b1_ref, w2_ref, b2_ref, w3t_ref, b3_ref, o_ref,
                 *, chunk):
    # Load (tiny) weights once per grid step.
    w1 = w1_ref[...]          # (64, 4)
    b1 = b1_ref[...]          # (64, 1)
    w2 = w2_ref[...]          # (128, 64)
    b2 = b2_ref[...]          # (128, 1)
    w3t = w3t_ref[...]        # (128, 1)
    b3 = b3_ref[0, 0]         # scalar (SMEM)

    n_chunks = o_ref.shape[1] // chunk   # static Python int

    def body(c, carry):
        start = pl.multiple_of(c * chunk, 128)
        xt = xt_ref[:, pl.ds(start, chunk)]                    # (4, chunk)

        # --- Layer 1 off the MXU: 4-term outer-product accumulation (VPU).
        # Bias is folded into the accumulator init (broadcast along lanes).
        h1 = b1                                                 # (64, 1)
        for k in range(4):                                      # static unroll, K=4
            h1 = h1 + w1[:, k:k + 1] * xt[k:k + 1, :]           # (64, chunk)
        h1 = jnp.maximum(h1, 0.0)

        # --- Layer 2: the only MXU matmul.
        h2 = jnp.dot(w2, h1, preferred_element_type=jnp.float32) + b2
        h2 = jnp.maximum(h2, 0.0)                               # (128, chunk)

        # --- Layer 3 off the MXU: VPU multiply + sublane (XLU) reduce.
        y = jnp.sum(w3t * h2, axis=0, keepdims=True) + b3       # (1, chunk)

        o_ref[:, pl.ds(start, chunk)] = y.astype(o_ref.dtype)   # lane-dense store
        return carry

    lax.fori_loop(0, n_chunks, body, None, unroll=True)


def gpnet_forward(x, params, *, tile_m=4096, chunk=512):
    """x: (B, 4) float32. Returns (B, 1) float32."""
    w1, b1, w2, b2, w3, b3 = params   # (64,4) (64,1) (128,64) (128,1) (1,128) (1,1)
    B = x.shape[0]

    chunk = min(chunk, tile_m)
    assert tile_m % 128 == 0, "tile_m must be a multiple of 128 (lane width)"
    assert chunk % 128 == 0, "chunk must be a multiple of 128 (lane width)"
    assert tile_m % chunk == 0, "tile_m must be a multiple of chunk"

    # Batch on the lane (minor) axis; pad to a tile multiple.  Under jit the
    # transpose + pad fuse into a single copy feeding the kernel.
    xt = x.T                                                    # (4, B)
    Bp = pl.cdiv(B, tile_m) * tile_m
    if Bp != B:
        xt = jnp.pad(xt, ((0, 0), (0, Bp - B)))
    grid = (Bp // tile_m,)

    w3t = w3.T                                                  # (128, 1)

    def const_spec(shape):
        # Same full weight block at every grid step (no re-DMA on unchanged index).
        return pl.BlockSpec(shape, lambda i: (0, 0))

    kernel = functools.partial(gpnet_kernel, chunk=chunk)

    out_t = pl.pallas_call(
        kernel,
        out_shape=jax.ShapeDtypeStruct((1, Bp), jnp.float32),
        grid_spec=pl.GridSpec(
            grid=grid,
            in_specs=[
                pl.BlockSpec((4, tile_m), lambda i: (0, i)),        # x^T batch tile
                const_spec((64, 4)),                                # W1
                const_spec((64, 1)),                                # b1
                const_spec((128, 64)),                              # W2
                const_spec((128, 1)),                               # b2
                const_spec((128, 1)),                               # W3^T
                pl.BlockSpec(memory_space=pltpu.MemorySpace.SMEM),  # b3 scalar
            ],
            out_specs=pl.BlockSpec((1, tile_m), lambda i: (0, i)),  # lane-dense out
        ),
        compiler_params=pltpu.CompilerParams(
            # Batch tiles are independent; lets the runtime shard them across
            # TensorCores where supported.
            # TODO(synk): on v7x, switch to pltpu.CORE_PARALLEL (or pl.core_map
            # over create_tensorcore_mesh) for explicit dual-TC sharding.
            dimension_semantics=("parallel",),
        ),
    )(xt, w1, b1, w2, b2, w3t, b3)

    return out_t[:, :B].reshape(B, 1)


def init_params(key):
    """PyTorch-style init; weights stored (out_features, in_features) like nn.Linear."""
    k1, k2, k3, k4, k5, k6 = jax.random.split(key, 6)

    def linear(kw, kb, fan_in, fan_out):
        # PyTorch default: U(-1/sqrt(fan_in), 1/sqrt(fan_in)) for both W and b.
        bound = 1.0 / jnp.sqrt(fan_in)
        w = jax.random.uniform(kw, (fan_out, fan_in), jnp.float32, -bound, bound)
        b = jax.random.uniform(kb, (fan_out, 1), jnp.float32, -bound, bound)
        return w, b

    w1, b1 = linear(k1, k2, 4, 64)
    w2, b2 = linear(k3, k4, 64, 128)
    w3, b3 = linear(k5, k6, 128, 1)
    return (w1, b1, w2, b2, w3, b3)


def reference_forward(x, params):
    w1, b1, w2, b2, w3, b3 = params
    h1 = jnp.maximum(x @ w1.T + b1.T, 0.0)
    h2 = jnp.maximum(h1 @ w2.T + b2.T, 0.0)
    return h2 @ w3.T + b3.T


if __name__ == "__main__":
    key = jax.random.PRNGKey(0)
    kx, kp = jax.random.split(key)

    # Small test: B not a tile multiple exercises the padding path; with
    # tile_m=256 / chunk=128 the padded grid has 2 steps and each step runs
    # 2 inner chunks, so both the multi-tile and multi-chunk paths execute.
    B = 300
    x = jax.random.normal(kx, (B, 4), dtype=jnp.float32)
    params = init_params(kp)

    fwd = jax.jit(lambda xx, pp: gpnet_forward(xx, pp, tile_m=256, chunk=128))
    out = jax.block_until_ready(fwd(x, params))

    ref = reference_forward(x, params)
    assert out.shape == (B, 1), out.shape
    assert jnp.allclose(out, ref, atol=1e-5, rtol=1e-5), (
        f"max abs err = {jnp.max(jnp.abs(out - ref))}"
    )

    print("KERNEL_OK")
</pallas_src>

<mosaic_0001>
module attributes {stable_mosaic.version = 11 : i64} {
  func.func @gpnet_kernel(%arg0: i32, %arg1: memref<4x256xf32, #tpu.memory_space<vmem>>, %arg2: memref<64x4xf32, #tpu.memory_space<vmem>>, %arg3: memref<64x1xf32, #tpu.memory_space<vmem>>, %arg4: memref<128x64xf32, #tpu.memory_space<vmem>>, %arg5: memref<128x1xf32, #tpu.memory_space<vmem>>, %arg6: memref<128x1xf32, #tpu.memory_space<vmem>>, %arg7: memref<1x1xf32, #tpu.memory_space<smem>>, %arg8: memref<1x256xf32, #tpu.memory_space<vmem>>) attributes {dimension_semantics = [#tpu.dimension_semantics<parallel>], iteration_bounds = array<i64: 2>, scalar_prefetch = 0 : i64, scratch_operands = 0 : i64, tpu.core_type = #tpu.core_type<tc>, window_params = [{transform_indices = @transform_0, window_bounds = array<i64: 4, 256>}, {pipeline_mode = #tpu.pipeline_mode<synchronous>, transform_indices = @transform_1, window_bounds = array<i64: 64, 4>}, {pipeline_mode = #tpu.pipeline_mode<synchronous>, transform_indices = @transform_2, window_bounds = array<i64: 64, 1>}, {pipeline_mode = #tpu.pipeline_mode<synchronous>, transform_indices = @transform_3, window_bounds = array<i64: 128, 64>}, {pipeline_mode = #tpu.pipeline_mode<synchronous>, transform_indices = @transform_4, window_bounds = array<i64: 128, 1>}, {pipeline_mode = #tpu.pipeline_mode<synchronous>, transform_indices = @transform_5, window_bounds = array<i64: 128, 1>}, {transform_indices = @transform_6, window_bounds = array<i64: 1, 1>}, {transform_indices = @transform_7, window_bounds = array<i64: 1, 256>}]} {
    %c0 = arith.constant 0 : index
    %c0_0 = arith.constant 0 : index
    %0 = vector.load %arg2[%c0, %c0_0] : memref<64x4xf32, #tpu.memory_space<vmem>>, vector<64x4xf32>
    %c0_1 = arith.constant 0 : index
    %c0_2 = arith.constant 0 : index
    %1 = vector.load %arg3[%c0_1, %c0_2] : memref<64x1xf32, #tpu.memory_space<vmem>>, vector<64x1xf32>
    %c0_3 = arith.constant 0 : index
    %c0_4 = arith.constant 0 : index
    %2 = vector.load %arg4[%c0_3, %c0_4] : memref<128x64xf32, #tpu.memory_space<vmem>>, vector<128x64xf32>
    %c0_5 = arith.constant 0 : index
    %c0_6 = arith.constant 0 : index
    %3 = vector.load %arg5[%c0_5, %c0_6] : memref<128x1xf32, #tpu.memory_space<vmem>>, vector<128x1xf32>
    %c0_7 = arith.constant 0 : index
    %c0_8 = arith.constant 0 : index
    %4 = vector.load %arg6[%c0_7, %c0_8] : memref<128x1xf32, #tpu.memory_space<vmem>>, vector<128x1xf32>
    %c0_9 = arith.constant 0 : index
    %c0_10 = arith.constant 0 : index
    %5 = memref.load %arg7[%c0_9, %c0_10] : memref<1x1xf32, #tpu.memory_space<smem>>
    %c0_i32 = arith.constant 0 : i32
    %c128_i32 = arith.constant 128 : i32
    %6 = arith.muli %c0_i32, %c128_i32 : i32
    %7 = tpu.assume_multiple %6, 128 : i32
    %c0_11 = arith.constant 0 : index
    %8 = arith.index_cast %7 : i32 to index
    %9 = vector.load %arg1[%c0_11, %8] : memref<4x256xf32, #tpu.memory_space<vmem>>, vector<4x128xf32>
    %10 = vector.extract_strided_slice %0 {offsets = [0, 0], sizes = [64, 1], strides = [1, 1]} : vector<64x4xf32> to vector<64x1xf32>
    %11 = vector.extract_strided_slice %9 {offsets = [0, 0], sizes = [1, 128], strides = [1, 1]} : vector<4x128xf32> to vector<1x128xf32>
    %12 = vector.broadcast %10 : vector<64x1xf32> to vector<64x128xf32>
    %13 = vector.broadcast %11 : vector<1x128xf32> to vector<64x128xf32>
    %14 = arith.mulf %12, %13 : vector<64x128xf32>
    %15 = vector.broadcast %1 : vector<64x1xf32> to vector<64x128xf32>
    %16 = arith.addf %15, %14 : vector<64x128xf32>
    %17 = vector.extract_strided_slice %0 {offsets = [0, 1], sizes = [64, 1], strides = [1, 1]} : vector<64x4xf32> to vector<64x1xf32>
    %18 = vector.extract_strided_slice %9 {offsets = [1, 0], sizes = [1, 128], strides = [1, 1]} : vector<4x128xf32> to vector<1x128xf32>
    %19 = vector.broadcast %17 : vector<64x1xf32> to vector<64x128xf32>
    %20 = vector.broadcast %18 : vector<1x128xf32> to vector<64x128xf32>
    %21 = arith.mulf %19, %20 : vector<64x128xf32>
    %22 = arith.addf %16, %21 : vector<64x128xf32>
    %23 = vector.extract_strided_slice %0 {offsets = [0, 2], sizes = [64, 1], strides = [1, 1]} : vector<64x4xf32> to vector<64x1xf32>
    %24 = vector.extract_strided_slice %9 {offsets = [2, 0], sizes = [1, 128], strides = [1, 1]} : vector<4x128xf32> to vector<1x128xf32>
    %25 = vector.broadcast %23 : vector<64x1xf32> to vector<64x128xf32>
    %26 = vector.broadcast %24 : vector<1x128xf32> to vector<64x128xf32>
    %27 = arith.mulf %25, %26 : vector<64x128xf32>
    %28 = arith.addf %22, %27 : vector<64x128xf32>
    %29 = vector.extract_strided_slice %0 {offsets = [0, 3], sizes = [64, 1], strides = [1, 1]} : vector<64x4xf32> to vector<64x1xf32>
    %30 = vector.extract_strided_slice %9 {offsets = [3, 0], sizes = [1, 128], strides = [1, 1]} : vector<4x128xf32> to vector<1x128xf32>
    %31 = vector.broadcast %29 : vector<64x1xf32> to vector<64x128xf32>
    %32 = vector.broadcast %30 : vector<1x128xf32> to vector<64x128xf32>
    %33 = arith.mulf %31, %32 : vector<64x128xf32>
    %34 = arith.addf %28, %33 : vector<64x128xf32>
    %cst = arith.constant 0.000000e+00 : f32
    %35 = vector.broadcast %cst : f32 to vector<64x128xf32>
    %36 = arith.maximumf %34, %35 : vector<64x128xf32>
    %cst_12 = arith.constant dense<0.000000e+00> : vector<128x128xf32>
    %37 = tpu.matmul %2, %36, %cst_12 {dimension_numbers = #tpu.dot_dimension_numbers<[1], [0], [0], [1], [0, 0, 1, 1], [], []>} : vector<128x64xf32>, vector<64x128xf32>, vector<128x128xf32> -> vector<128x128xf32>
    %38 = vector.broadcast %3 : vector<128x1xf32> to vector<128x128xf32>
    %39 = arith.addf %37, %38 : vector<128x128xf32>
    %cst_13 = arith.constant 0.000000e+00 : f32
    %40 = vector.broadcast %cst_13 : f32 to vector<128x128xf32>
    %41 = arith.maximumf %39, %40 : vector<128x128xf32>
    %42 = vector.broadcast %4 : vector<128x1xf32> to vector<128x128xf32>
    %43 = arith.mulf %42, %41 : vector<128x128xf32>
    %cst_14 = arith.constant dense<0.000000e+00> : vector<128xf32>
    %44 = vector.multi_reduction <add>, %43, %cst_14 [0] : vector<128x128xf32> to vector<128xf32>
    %45 = vector.shape_cast %44 : vector<128xf32> to vector<1x128xf32>
    %46 = vector.broadcast %5 : f32 to vector<1x128xf32>
    %47 = arith.addf %45, %46 : vector<1x128xf32>
    %c0_15 = arith.constant 0 : index
    %48 = arith.index_cast %7 : i32 to index
    %49 = vector.load %arg8[%c0_15, %48] : memref<1x256xf32, #tpu.memory_space<vmem>>, vector<1x128xf32>
    tpu.vector_store %arg8[%c0_15, %48], %47 {strides = array<i32>} : memref<1x256xf32, #tpu.memory_space<vmem>>, vector<1x128xf32>,
    %c1_i32 = arith.constant 1 : i32
    %c128_i32_16 = arith.constant 128 : i32
    %50 = arith.muli %c1_i32, %c128_i32_16 : i32
    %51 = tpu.assume_multiple %50, 128 : i32
    %c0_17 = arith.constant 0 : index
    %52 = arith.index_cast %51 : i32 to index
    %53 = vector.load %arg1[%c0_17, %52] : memref<4x256xf32, #tpu.memory_space<vmem>>, vector<4x128xf32>
    %54 = vector.extract_strided_slice %0 {offsets = [0, 0], sizes = [64, 1], strides = [1, 1]} : vector<64x4xf32> to vector<64x1xf32>
    %55 = vector.extract_strided_slice %53 {offsets = [0, 0], sizes = [1, 128], strides = [1, 1]} : vector<4x128xf32> to vector<1x128xf32>
    %56 = vector.broadcast %54 : vector<64x1xf32> to vector<64x128xf32>
    %57 = vector.broadcast %55 : vector<1x128xf32> to vector<64x128xf32>
    %58 = arith.mulf %56, %57 : vector<64x128xf32>
    %59 = vector.broadcast %1 : vector<64x1xf32> to vector<64x128xf32>
    %60 = arith.addf %59, %58 : vector<64x128xf32>
    %61 = vector.extract_strided_slice %0 {offsets = [0, 1], sizes = [64, 1], strides = [1, 1]} : vector<64x4xf32> to vector<64x1xf32>
    %62 = vector.extract_strided_slice %53 {offsets = [1, 0], sizes = [1, 128], strides = [1, 1]} : vector<4x128xf32> to vector<1x128xf32>
    %63 = vector.broadcast %61 : vector<64x1xf32> to vector<64x128xf32>
    %64 = vector.broadcast %62 : vector<1x128xf32> to vector<64x128xf32>
    %65 = arith.mulf %63, %64 : vector<64x128xf32>
    %66 = arith.addf %60, %65 : vector<64x128xf32>
    %67 = vector.extract_strided_slice %0 {offsets = [0, 2], sizes = [64, 1], strides = [1, 1]} : vector<64x4xf32> to vector<64x1xf32>
    %68 = vector.extract_strided_slice %53 {offsets = [2, 0], sizes = [1, 128], strides = [1, 1]} : vector<4x128xf32> to vector<1x128xf32>
    %69 = vector.broadcast %67 : vector<64x1xf32> to vector<64x128xf32>
    %70 = vector.broadcast %68 : vector<1x128xf32> to vector<64x128xf32>
    %71 = arith.mulf %69, %70 : vector<64x128xf32>
    %72 = arith.addf %66, %71 : vector<64x128xf32>
    %73 = vector.extract_strided_slice %0 {offsets = [0, 3], sizes = [64, 1], strides = [1, 1]} : vector<64x4xf32> to vector<64x1xf32>
    %74 = vector.extract_strided_slice %53 {offsets = [3, 0], sizes = [1, 128], strides = [1, 1]} : vector<4x128xf32> to vector<1x128xf32>
    %75 = vector.broadcast %73 : vector<64x1xf32> to vector<64x128xf32>
    %76 = vector.broadcast %74 : vector<1x128xf32> to vector<64x128xf32>
    %77 = arith.mulf %75, %76 : vector<64x128xf32>
    %78 = arith.addf %72, %77 : vector<64x128xf32>
    %cst_18 = arith.constant 0.000000e+00 : f32
    %79 = vector.broadcast %cst_18 : f32 to vector<64x128xf32>
    %80 = arith.maximumf %78, %79 : vector<64x128xf32>
    %cst_19 = arith.constant dense<0.000000e+00> : vector<128x128xf32>
    %81 = tpu.matmul %2, %80, %cst_19 {dimension_numbers = #tpu.dot_dimension_numbers<[1], [0], [0], [1], [0, 0, 1, 1], [], []>} : vector<128x64xf32>, vector<64x128xf32>, vector<128x128xf32> -> vector<128x128xf32>
    %82 = vector.broadcast %3 : vector<128x1xf32> to vector<128x128xf32>
    %83 = arith.addf %81, %82 : vector<128x128xf32>
    %cst_20 = arith.constant 0.000000e+00 : f32
    %84 = vector.broadcast %cst_20 : f32 to vector<128x128xf32>
    %85 = arith.maximumf %83, %84 : vector<128x128xf32>
    %86 = vector.broadcast %4 : vector<128x1xf32> to vector<128x128xf32>
    %87 = arith.mulf %86, %85 : vector<128x128xf32>
    %cst_21 = arith.constant dense<0.000000e+00> : vector<128xf32>
    %88 = vector.multi_reduction <add>, %87, %cst_21 [0] : vector<128x128xf32> to vector<128xf32>
    %89 = vector.shape_cast %88 : vector<128xf32> to vector<1x128xf32>
    %90 = vector.broadcast %5 : f32 to vector<1x128xf32>
    %91 = arith.addf %89, %90 : vector<1x128xf32>
    %c0_22 = arith.constant 0 : index
    %92 = arith.index_cast %51 : i32 to index
    %93 = vector.load %arg8[%c0_22, %92] : memref<1x256xf32, #tpu.memory_space<vmem>>, vector<1x128xf32>
    tpu.vector_store %arg8[%c0_22, %92], %91 {strides = array<i32>} : memref<1x256xf32, #tpu.memory_space<vmem>>, vector<1x128xf32>,
    %c2_i32 = arith.constant 2 : i32
    return
  }
  func.func @transform_0(%arg0: i32) -> (i32, i32) {
    %c0_i32 = arith.constant 0 : i32
    %c0_i32_0 = arith.constant 0 : i32
    return %c0_i32, %arg0 : i32, i32
  }
  func.func @transform_1(%arg0: i32) -> (i32, i32) {
    %c0_i32 = arith.constant 0 : i32
    %c0_i32_0 = arith.constant 0 : i32
    %c0_i32_1 = arith.constant 0 : i32
    return %c0_i32, %c0_i32_0 : i32, i32
  }
  func.func @transform_2(%arg0: i32) -> (i32, i32) {
    %c0_i32 = arith.constant 0 : i32
    %c0_i32_0 = arith.constant 0 : i32
    %c0_i32_1 = arith.constant 0 : i32
    return %c0_i32, %c0_i32_0 : i32, i32
  }
  func.func @transform_3(%arg0: i32) -> (i32, i32) {
    %c0_i32 = arith.constant 0 : i32
    %c0_i32_0 = arith.constant 0 : i32
    %c0_i32_1 = arith.constant 0 : i32
    return %c0_i32, %c0_i32_0 : i32, i32
  }
  func.func @transform_4(%arg0: i32) -> (i32, i32) {
    %c0_i32 = arith.constant 0 : i32
    %c0_i32_0 = arith.constant 0 : i32
    %c0_i32_1 = arith.constant 0 : i32
    return %c0_i32, %c0_i32_0 : i32, i32
  }
  func.func @transform_5(%arg0: i32) -> (i32, i32) {
    %c0_i32 = arith.constant 0 : i32
    %c0_i32_0 = arith.constant 0 : i32
    %c0_i32_1 = arith.constant 0 : i32
    return %c0_i32, %c0_i32_0 : i32, i32
  }
  func.func @transform_6(%arg0: i32) -> (i32, i32) {
    %c0_i32 = arith.constant 0 : i32
    %c0_i32_0 = arith.constant 0 : i32
    %c0_i32_1 = arith.constant 0 : i32
    return %c0_i32, %c0_i32_0 : i32, i32
  }
  func.func @transform_7(%arg0: i32) -> (i32, i32) {
    %c0_i32 = arith.constant 0 : i32
    %c0_i32_0 = arith.constant 0 : i32
    return %c0_i32, %arg0 : i32, i32
  }
}

</mosaic_0001>

<llo_original>
// kernel: _lambda_.1
$region0: #{_lambda_.1}
  #allocation0 [shape = 'u32[]', space=smem, size = 0x4, offset = 0x4, fixed_abs, tag = 'smem constant byte address 0x4 - core index']
  #allocation1 [shape = 'u32[72,128]{1,0:T(1,128)}', space=vmem, size = 0x9000, scoped, tag = 'internal scratch']
  #allocation2 [shape = 'f32[1,1]{1,0:T(1,128)S(6)}', space=smem, size = 0x200, scoped, tag = 'scoped memory for _lambda_.1']
  %s0 = inlined_call_operand.vmem [shape: f32[4,512], index: 0, kind: input, shape index: {}]
  %s1 = inlined_call_operand.vmem [shape: f32[64,4], index: 1, kind: input, shape index: {}]
  %s2 = inlined_call_operand.vmem [shape: f32[64,1], index: 2, kind: input, shape index: {}]
  %s3 = inlined_call_operand.vmem [shape: f32[128,64], index: 3, kind: input, shape index: {}]
  %s4 = inlined_call_operand.vmem [shape: f32[128,1], index: 4, kind: input, shape index: {}]
  %s5 = inlined_call_operand.vmem [shape: f32[128,1], index: 5, kind: input, shape index: {}]
  %s6 = inlined_call_operand.<no memory space> [shape: f32[1,1], index: 6, kind: input, shape index: {}]
  %s7 = inlined_call_operand.vmem [shape: f32[1,512], index: 7, kind: output, shape index: {}]
  %s8 = sld [smem:[#allocation0]]
  $region61: #{_lambda_.1} parent=0
    _
  %s10 = ssub.s32 1, %s8
  %s11 = scalar_select 0, %s10, %s8
  %12 = sst [smem:[#allocation2]] %s6
  loop: start=0, step=1, limit=4
  $region2: #{_lambda_.1} parent=0 // loop_pre_header
    _
  $region3: #{_lambda_.1} parent=0 // loop_header
    %s14 = sphi 0, %s18
    %p15 = scmp.ge.s32.totalorder %s14, 4
    %s24 = sphi 0, %s26
    %s27 = sphi 0, %s24
    %s28 = sphi 0, %s27
    %s44 = sphi 0, %s28
    %s48 = sphi 0, %s48
    %s50 = sphi 0, %s48
    %s51 = sphi 0, %s50
    %s65 = sphi 0, %s51
    %s69 = sphi 0, %s69
    %s71 = sphi 0, %s69
    %s72 = sphi 0, %s71
    %s86 = sphi 0, %s72
    %s90 = sphi 0, %s90
    %s92 = sphi 0, %s90
    %s93 = sphi 0, %s92
    %s107 = sphi 0, %s93
    %s111 = sphi 0, %s111
    %s113 = sphi 0, %s111
    %s114 = sphi 0, %s113
    %s128 = sphi 0, %s114
    %s132 = sphi 0, %s132
    %s134 = sphi 0, %s132
    %s135 = sphi 0, %s134
    %s149 = sphi 0, %s135
    %s153 = sphi 0, %s153
    %s155 = sphi 0, %s153
    %s156 = sphi 0, %s155
    %s170 = sphi 0, %s156
    %s176 = sphi 0, %s178
    %s179 = sphi 0, %s176
    %s180 = sphi 0, %s179
    %s196 = sphi 0, %s180
  $region4: #{_lambda_.1} parent=0 // loop_header_branch
    %17 = sbr.rel (%p15) target = $region8
  $region5: #{_lambda_.1} parent=0 // loop_body
    %s19 = ssub.s32 %s14, 1
    %s20 = ssub.s32 %s14, 2
    %s21 = sadd.s32 %s14, 1
    %s22 = ssub.s32 %s14, %s21
    %p23 = scmp.eq.s32.totalorder %s22, 0
    %s25 = sadd.s32 %s24, 1
    %s26 = scalar_select %p23, %s24, %s25
    %p29 = pneg %p23
    %p30 = scmp.eq.s32.totalorder %s14, 1
    %p31 = por %p29, %p30
    %p32 = scmp.ne.s32.totalorder %s24, %s27
    %p33 = scmp.eq.s32.totalorder %s14, 0
    %p34 = por %p32, %p33
    %p35 = scmp.ne.s32.totalorder %s24, %s27
    %p36 = scmp.eq.s32.totalorder %s19, 1
    %p37 = por %p35, %p36
    %p38 = scmp.ne.s32.totalorder %s27, %s28
    %p39 = scmp.eq.s32.totalorder %s19, 0
    %p40 = por %p38, %p39
    %p41 = scmp.ne.s32.totalorder %s27, %s28
    %p42 = scmp.eq.s32.totalorder %s20, 1
    %p43 = por %p41, %p42
    %p45 = scmp.ne.s32.totalorder %s28, %s44
    %p46 = scmp.eq.s32.totalorder %s20, 0
    %p47 = por %p45, %p46
    %s49 = sadd.s32 %s48, 1
    %p52 = scmp.eq.s32.totalorder %s14, 1
    %p53 = scmp.ne.s32.totalorder %s48, %s50
    %p54 = scmp.eq.s32.totalorder %s14, 0
    %p55 = por %p53, %p54
    %p56 = scmp.ne.s32.totalorder %s48, %s50
    %p57 = scmp.eq.s32.totalorder %s19, 1
    %p58 = por %p56, %p57
    %p59 = scmp.ne.s32.totalorder %s50, %s51
    %p60 = scmp.eq.s32.totalorder %s19, 0
    %p61 = por %p59, %p60
    %p62 = scmp.ne.s32.totalorder %s50, %s51
    %p63 = scmp.eq.s32.totalorder %s20, 1
    %p64 = por %p62, %p63
    %p66 = scmp.ne.s32.totalorder %s51, %s65
    %p67 = scmp.eq.s32.totalorder %s20, 0
    %p68 = por %p66, %p67
    %s70 = sadd.s32 %s69, 1
    %p73 = scmp.eq.s32.totalorder %s14, 1
    %p74 = scmp.ne.s32.totalorder %s69, %s71
    %p75 = scmp.eq.s32.totalorder %s14, 0
    %p76 = por %p74, %p75
    %p77 = scmp.ne.s32.totalorder %s69, %s71
    %p78 = scmp.eq.s32.totalorder %s19, 1
    %p79 = por %p77, %p78
    %p80 = scmp.ne.s32.totalorder %s71, %s72
    %p81 = scmp.eq.s32.totalorder %s19, 0
    %p82 = por %p80, %p81
    %p83 = scmp.ne.s32.totalorder %s71, %s72
    %p84 = scmp.eq.s32.totalorder %s20, 1
    %p85 = por %p83, %p84
    %p87 = scmp.ne.s32.totalorder %s72, %s86
    %p88 = scmp.eq.s32.totalorder %s20, 0
    %p89 = por %p87, %p88
    %s91 = sadd.s32 %s90, 1
    %p94 = scmp.eq.s32.totalorder %s14, 1
    %p95 = scmp.ne.s32.totalorder %s90, %s92
    %p96 = scmp.eq.s32.totalorder %s14, 0
    %p97 = por %p95, %p96
    %p98 = scmp.ne.s32.totalorder %s90, %s92
    %p99 = scmp.eq.s32.totalorder %s19, 1
    %p100 = por %p98, %p99
    %p101 = scmp.ne.s32.totalorder %s92, %s93
    %p102 = scmp.eq.s32.totalorder %s19, 0
    %p103 = por %p101, %p102
    %p104 = scmp.ne.s32.totalorder %s92, %s93
    %p105 = scmp.eq.s32.totalorder %s20, 1
    %p106 = por %p104, %p105
    %p108 = scmp.ne.s32.totalorder %s93, %s107
    %p109 = scmp.eq.s32.totalorder %s20, 0
    %p110 = por %p108, %p109
    %s112 = sadd.s32 %s111, 1
    %p115 = scmp.eq.s32.totalorder %s14, 1
    %p116 = scmp.ne.s32.totalorder %s111, %s113
    %p117 = scmp.eq.s32.totalorder %s14, 0
    %p118 = por %p116, %p117
    %p119 = scmp.ne.s32.totalorder %s111, %s113
    %p120 = scmp.eq.s32.totalorder %s19, 1
    %p121 = por %p119, %p120
    %p122 = scmp.ne.s32.totalorder %s113, %s114
    %p123 = scmp.eq.s32.totalorder %s19, 0
    %p124 = por %p122, %p123
    %p125 = scmp.ne.s32.totalorder %s113, %s114
    %p126 = scmp.eq.s32.totalorder %s20, 1
    %p127 = por %p125, %p126
    %p129 = scmp.ne.s32.totalorder %s114, %s128
    %p130 = scmp.eq.s32.totalorder %s20, 0
    %p131 = por %p129, %p130
    %s133 = sadd.s32 %s132, 1
    %p136 = scmp.eq.s32.totalorder %s14, 1
    %p137 = scmp.ne.s32.totalorder %s132, %s134
    %p138 = scmp.eq.s32.totalorder %s14, 0
    %p139 = por %p137, %p138
    %p140 = scmp.ne.s32.totalorder %s132, %s134
    %p141 = scmp.eq.s32.totalorder %s19, 1
    %p142 = por %p140, %p141
    %p143 = scmp.ne.s32.totalorder %s134, %s135
    %p144 = scmp.eq.s32.totalorder %s19, 0
    %p145 = por %p143, %p144
    %p146 = scmp.ne.s32.totalorder %s134, %s135
    %p147 = scmp.eq.s32.totalorder %s20, 1
    %p148 = por %p146, %p147
    %p150 = scmp.ne.s32.totalorder %s135, %s149
    %p151 = scmp.eq.s32.totalorder %s20, 0
    %p152 = por %p150, %p151
    %s154 = sadd.s32 %s153, 1
    %p157 = scmp.eq.s32.totalorder %s14, 1
    %p158 = scmp.ne.s32.totalorder %s153, %s155
    %p159 = scmp.eq.s32.totalorder %s14, 0
    %p160 = por %p158, %p159
    %p161 = scmp.ne.s32.totalorder %s153, %s155
    %p162 = scmp.eq.s32.totalorder %s19, 1
    %p163 = por %p161, %p162
    %p164 = scmp.ne.s32.totalorder %s155, %s156
    %p165 = scmp.eq.s32.totalorder %s19, 0
    %p166 = por %p164, %p165
    %p167 = scmp.ne.s32.totalorder %s155, %s156
    %p168 = scmp.eq.s32.totalorder %s20, 1
    %p169 = por %p167, %p168
    %p171 = scmp.ne.s32.totalorder %s156, %s170
    %p172 = scmp.eq.s32.totalorder %s20, 0
    %p173 = por %p171, %p172
    %s174 = ssub.s32 %s14, %s21
    %p175 = scmp.eq.s32.totalorder %s174, 0
    %s177 = sadd.s32 %s176, 1
    %s178 = scalar_select %p175, %s176, %s177
    %p181 = pneg %p175
    %p182 = scmp.eq.s32.totalorder %s14, 1
    %p183 = por %p181, %p182
    %p184 = scmp.ne.s32.totalorder %s176, %s179
    %p185 = scmp.eq.s32.totalorder %s14, 0
    %p186 = por %p184, %p185
    %p187 = scmp.ne.s32.totalorder %s176, %s179
    %p188 = scmp.eq.s32.totalorder %s19, 1
    %p189 = por %p187, %p188
    %p190 = scmp.ne.s32.totalorder %s179, %s180
    %p191 = scmp.eq.s32.totalorder %s19, 0
    %p192 = por %p190, %p191
    %p193 = scmp.ne.s32.totalorder %s179, %s180
    %p194 = scmp.eq.s32.totalorder %s20, 1
    %p195 = por %p193, %p194
    %p197 = scmp.ne.s32.totalorder %s180, %s196
    %p198 = scmp.eq.s32.totalorder %s20, 0
    %p199 = por %p197, %p198
    %p200 = scmp.le.s32.totalorder 1, %s14
    %p201 = scmp.lt.s32.totalorder %s14, 3
    %p202 = pnand %p200, %p201
    %p203 = pneg %p202
    // Predicated region
    $region9: #{_lambda_.1} parent=5 // pred_check
      _
    $region10: #{_lambda_.1} parent=5 // pred_check_branch
      %205 = sbr.rel (%p202) target = $region12
    $region11: #{_lambda_.1} parent=5 // pred_region
      %s206 = ssub.s32 %s14, 1
      // Predicated region
      $region13: #{_lambda_.1} parent=11 // pred_check
        %p207 = pneg %p61
      $region14: #{_lambda_.1} parent=11 // pred_check_branch
        %209 = sbr.rel (%p207) target = $region16
      $region15: #{_lambda_.1} parent=11 // pred_region
        _
      $region16: #{_lambda_.1} parent=11 // pred_fallthru
        _
      // Predicated region
      $region17: #{_lambda_.1} parent=11 // pred_check
        %p210 = pneg %p82
      $region18: #{_lambda_.1} parent=11 // pred_check_branch
        %212 = sbr.rel (%p210) target = $region20
      $region19: #{_lambda_.1} parent=11 // pred_region
        _
      $region20: #{_lambda_.1} parent=11 // pred_fallthru
        _
      // Predicated region
      $region21: #{_lambda_.1} parent=11 // pred_check
        %p213 = pneg %p103
      $region22: #{_lambda_.1} parent=11 // pred_check_branch
        %215 = sbr.rel (%p213) target = $region24
      $region23: #{_lambda_.1} parent=11 // pred_region
        _
      $region24: #{_lambda_.1} parent=11 // pred_fallthru
        _
      // Predicated region
      $region25: #{_lambda_.1} parent=11 // pred_check
        %p216 = pneg %p124
      $region26: #{_lambda_.1} parent=11 // pred_check_branch
        %218 = sbr.rel (%p216) target = $region28
      $region27: #{_lambda_.1} parent=11 // pred_region
        _
      $region28: #{_lambda_.1} parent=11 // pred_fallthru
        _
      // Predicated region
      $region29: #{_lambda_.1} parent=11 // pred_check
        %p219 = pneg %p145
      $region30: #{_lambda_.1} parent=11 // pred_check_branch
        %221 = sbr.rel (%p219) target = $region32
      $region31: #{_lambda_.1} parent=11 // pred_region
        _
      $region32: #{_lambda_.1} parent=11 // pred_fallthru
        _
      // Predicated region
      $region33: #{_lambda_.1} parent=11 // pred_check
        %p222 = pneg %p166
      $region34: #{_lambda_.1} parent=11 // pred_check_branch
        %224 = sbr.rel (%p222) target = $region36
      $region35: #{_lambda_.1} parent=11 // pred_region
        _
      $region36: #{_lambda_.1} parent=11 // pred_fallthru
        _
    $region12: #{_lambda_.1} parent=5 // pred_fallthru
      _
    %p225 = scmp.lt.s32.totalorder %s14, 2
    // Predicated region
    $region37: #{_lambda_.1} parent=5 // pred_check
      %p226 = pneg %p225
    $region38: #{_lambda_.1} parent=5 // pred_check_branch
      %228 = sbr.rel (%p226) target = $region40
    $region39: #{_lambda_.1} parent=5 // pred_region
      // Predicated region
      $region41: #{_lambda_.1} parent=39 // pred_check
        %p229 = pneg %p34
      $region42: #{_lambda_.1} parent=39 // pred_check_branch
        %231 = sbr.rel (%p229) target = $region44
      $region43: #{_lambda_.1} parent=39 // pred_region
        %s232 = smul.u32 2, %s14
        %p233 = scmp.lt.s32.totalorder %s232, 3
        %s234 = scalar_select %p233, %s232, 3
        %s235 = smul.addr %s234, 4
        %s236 = scalar_lea.vmem %s0, %s235
        %s237 = smul.u32 2, %s14
      $region44: #{_lambda_.1} parent=39 // pred_fallthru
        _
    $region40: #{_lambda_.1} parent=5 // pred_fallthru
      _
    %p238 = scmp.le.s32.totalorder 1, %s14
    %p239 = scmp.lt.s32.totalorder %s14, 3
    %p240 = pnand %p238, %p239
    %p241 = pneg %p240
    // Predicated region
    $region45: #{_lambda_.1} parent=5 // pred_check
      _
    $region46: #{_lambda_.1} parent=5 // pred_check_branch
      %243 = sbr.rel (%p240) target = $region48
    $region47: #{_lambda_.1} parent=5 // pred_region
      %s244 = ssub.s32 %s14, 1
      %s245 = smul.u32 2, %s19
      %p246 = scmp.lt.s32.totalorder %s245, 3
      %s247 = scalar_select %p246, %s245, 3
      %s248 = smul.addr %s247, 4
      %s249 = scalar_lea.vmem %s0, %s248
      %p250 = pneg %p40
      %p251 = pneg %p37
      %p252 = pneg %p61
      %p253 = pneg %p58
      %p254 = pneg %p82
      %p255 = pneg %p79
      %p256 = pneg %p103
      %p257 = pneg %p100
      %p258 = pneg %p124
      %p259 = pneg %p121
      %p260 = pneg %p145
      %p261 = pneg %p142
      %p262 = pneg %p166
      %p263 = pneg %p163
      %p264 = pneg %p192
      %p265 = pneg %p189
      %s266 = smul.u32 2, %s19
      %p267 = scmp.lt.s32.totalorder %s266, 3
      %s268 = scalar_select %p267, %s266, 3
      %s269 = scalar_lea.vmem %s7, %s268
      %s270 = smul.u32 2, %s19
      %p271 = scmp.lt.s32.totalorder %s270, 3
      %s272 = scalar_select %p271, %s270, 3
      %s273 = smul.addr %s272, 4
      %s274 = scalar_lea.vmem %s0, %s273
      %s275 = smul.u32 2, %s19
      %s276 = smul.u32 2, %s19
      %p277 = scmp.lt.s32.totalorder %s276, 3
      %s278 = scalar_select %p277, %s276, 3
      %s279 = scalar_lea.vmem %s7, %s278
      %s280 = smul.u32 2, %s19
      %v281 = vld [vmem:[%s1] sm:$0xff]
      %v282 = vld [vmem:[%s1 + $0x8] sm:$0xff]
      %v283 = vld [vmem:[%s1 + $0x10] sm:$0xff]
      %v284 = vld [vmem:[%s1 + $0x18] sm:$0xff]
      %v285 = vld [vmem:[%s1 + $0x20] sm:$0xff]
      %v286 = vld [vmem:[%s1 + $0x28] sm:$0xff]
      %v287 = vld [vmem:[%s1 + $0x30] sm:$0xff]
      %v288 = vld [vmem:[%s1 + $0x38] sm:$0xff]
      %v289 = vld [vmem:[%s2] sm:$0xff]
      %v290 = vld [vmem:[%s2 + $0x8] sm:$0xff]
      %v291 = vld [vmem:[%s2 + $0x10] sm:$0xff]
      %v292 = vld [vmem:[%s2 + $0x18] sm:$0xff]
      %v293 = vld [vmem:[%s2 + $0x20] sm:$0xff]
      %v294 = vld [vmem:[%s2 + $0x28] sm:$0xff]
      %v295 = vld [vmem:[%s2 + $0x30] sm:$0xff]
      %v296 = vld [vmem:[%s2 + $0x38] sm:$0xff]
      %v297 = vld [vmem:[%s3] sm:$0xff]
      %v298 = vld [vmem:[%s3 + $0x8] sm:$0xff]
      %v299 = vld [vmem:[%s3 + $0x10] sm:$0xff]
      %v300 = vld [vmem:[%s3 + $0x18] sm:$0xff]
      %v301 = vld [vmem:[%s3 + $0x20] sm:$0xff]
      %v302 = vld [vmem:[%s3 + $0x28] sm:$0xff]
      %v303 = vld [vmem:[%s3 + $0x30] sm:$0xff]
      %v304 = vld [vmem:[%s3 + $0x38] sm:$0xff]
      %v305 = vld [vmem:[%s3 + $0x40] sm:$0xff]
      %v306 = vld [vmem:[%s3 + $0x48] sm:$0xff]
      %v307 = vld [vmem:[%s3 + $0x50] sm:$0xff]
      %v308 = vld [vmem:[%s3 + $0x58] sm:$0xff]
      %v309 = vld [vmem:[%s3 + $0x60] sm:$0xff]
      %v310 = vld [vmem:[%s3 + $0x68] sm:$0xff]
      %v311 = vld [vmem:[%s3 + $0x70] sm:$0xff]
      %v312 = vld [vmem:[%s3 + $0x78] sm:$0xff]
      %v313 = vld [vmem:[%s4] sm:$0xff]
      %v314 = vld [vmem:[%s4 + $0x8] sm:$0xff]
      %v315 = vld [vmem:[%s4 + $0x10] sm:$0xff]
      %v316 = vld [vmem:[%s4 + $0x18] sm:$0xff]
      %v317 = vld [vmem:[%s4 + $0x20] sm:$0xff]
      %v318 = vld [vmem:[%s4 + $0x28] sm:$0xff]
      %v319 = vld [vmem:[%s4 + $0x30] sm:$0xff]
      %v320 = vld [vmem:[%s4 + $0x38] sm:$0xff]
      %v321 = vld [vmem:[%s4 + $0x40] sm:$0xff]
      %v322 = vld [vmem:[%s4 + $0x48] sm:$0xff]
      %v323 = vld [vmem:[%s4 + $0x50] sm:$0xff]
      %v324 = vld [vmem:[%s4 + $0x58] sm:$0xff]
      %v325 = vld [vmem:[%s4 + $0x60] sm:$0xff]
      %v326 = vld [vmem:[%s4 + $0x68] sm:$0xff]
      %v327 = vld [vmem:[%s4 + $0x70] sm:$0xff]
      %v328 = vld [vmem:[%s4 + $0x78] sm:$0xff]
      %v329 = vld [vmem:[%s5] sm:$0xff]
      %v330 = vld [vmem:[%s5 + $0x8] sm:$0xff]
      %v331 = vld [vmem:[%s5 + $0x10] sm:$0xff]
      %v332 = vld [vmem:[%s5 + $0x18] sm:$0xff]
      %v333 = vld [vmem:[%s5 + $0x20] sm:$0xff]
      %v334 = vld [vmem:[%s5 + $0x28] sm:$0xff]
      %v335 = vld [vmem:[%s5 + $0x30] sm:$0xff]
      %v336 = vld [vmem:[%s5 + $0x38] sm:$0xff]
      %v337 = vld [vmem:[%s5 + $0x40] sm:$0xff]
      %v338 = vld [vmem:[%s5 + $0x48] sm:$0xff]
      %v339 = vld [vmem:[%s5 + $0x50] sm:$0xff]
      %v340 = vld [vmem:[%s5 + $0x58] sm:$0xff]
      %v341 = vld [vmem:[%s5 + $0x60] sm:$0xff]
      %v342 = vld [vmem:[%s5 + $0x68] sm:$0xff]
      %v343 = vld [vmem:[%s5 + $0x70] sm:$0xff]
      %v344 = vld [vmem:[%s5 + $0x78] sm:$0xff]
      %s345 = sld [smem:[#allocation2]]
      %v346 = vld [vmem:[%s274] sm:$0xf]
      %348 = vset.pattern.permute.xlu0 0
      %349 = vperm.xlu0 %348, %v281
      %v350 = vpop.permute.xlu0 %349
      %353 = vset.pattern.permute.xlu0 0
      %354 = vperm.xlu0 %353, %v282
      %v355 = vpop.permute.xlu0 %354
      %358 = vset.pattern.permute.xlu0 0
      %359 = vperm.xlu0 %358, %v283
      %v360 = vpop.permute.xlu0 %359
      %363 = vset.pattern.permute.xlu0 0
      %364 = vperm.xlu0 %363, %v284
      %v365 = vpop.permute.xlu0 %364
      %368 = vset.pattern.permute.xlu0 0
      %369 = vperm.xlu0 %368, %v285
      %v370 = vpop.permute.xlu0 %369
      %373 = vset.pattern.permute.xlu0 0
      %374 = vperm.xlu0 %373, %v286
      %v375 = vpop.permute.xlu0 %374
      %378 = vset.pattern.permute.xlu0 0
      %379 = vperm.xlu0 %378, %v287
      %v380 = vpop.permute.xlu0 %379
      %383 = vset.pattern.permute.xlu0 0
      %384 = vperm.xlu0 %383, %v288
      %v385 = vpop.permute.xlu0 %384
      %v387 = vperm.slane %v346, 0
      %v388 = vmul.f32 %v350, %v387
      %v389 = vmul.f32 %v355, %v387
      %v390 = vmul.f32 %v360, %v387
      %v391 = vmul.f32 %v365, %v387
      %v392 = vmul.f32 %v370, %v387
      %v393 = vmul.f32 %v375, %v387
      %v394 = vmul.f32 %v380, %v387
      %v395 = vmul.f32 %v385, %v387
      %397 = vset.pattern.permute.xlu0 0
      %398 = vperm.xlu0 %397, %v289
      %v399 = vpop.permute.xlu0 %398
      %402 = vset.pattern.permute.xlu0 0
      %403 = vperm.xlu0 %402, %v290
      %v404 = vpop.permute.xlu0 %403
      %407 = vset.pattern.permute.xlu0 0
      %408 = vperm.xlu0 %407, %v291
      %v409 = vpop.permute.xlu0 %408
      %412 = vset.pattern.permute.xlu0 0
      %413 = vperm.xlu0 %412, %v292
      %v414 = vpop.permute.xlu0 %413
      %417 = vset.pattern.permute.xlu0 0
      %418 = vperm.xlu0 %417, %v293
      %v419 = vpop.permute.xlu0 %418
      %422 = vset.pattern.permute.xlu0 0
      %423 = vperm.xlu0 %422, %v294
      %v424 = vpop.permute.xlu0 %423
      %427 = vset.pattern.permute.xlu0 0
      %428 = vperm.xlu0 %427, %v295
      %v429 = vpop.permute.xlu0 %428
      %432 = vset.pattern.permute.xlu0 0
      %433 = vperm.xlu0 %432, %v296
      %v434 = vpop.permute.xlu0 %433
      %v436 = vadd.f32 %v399, %v388
      %v437 = vadd.f32 %v404, %v389
      %v438 = vadd.f32 %v409, %v390
      %v439 = vadd.f32 %v414, %v391
      %v440 = vadd.f32 %v419, %v392
      %v441 = vadd.f32 %v424, %v393
      %v442 = vadd.f32 %v429, %v394
      %v443 = vadd.f32 %v434, %v395
      %444 = vset.pattern.permute.xlu0 1
      %445 = vperm.xlu0 %444, %v281
      %v446 = vpop.permute.xlu0 %445
      %448 = vset.pattern.permute.xlu0 1
      %449 = vperm.xlu0 %448, %v282
      %v450 = vpop.permute.xlu0 %449
      %452 = vset.pattern.permute.xlu0 1
      %453 = vperm.xlu0 %452, %v283
      %v454 = vpop.permute.xlu0 %453
      %456 = vset.pattern.permute.xlu0 1
      %457 = vperm.xlu0 %456, %v284
      %v458 = vpop.permute.xlu0 %457
      %460 = vset.pattern.permute.xlu0 1
      %461 = vperm.xlu0 %460, %v285
      %v462 = vpop.permute.xlu0 %461
      %464 = vset.pattern.permute.xlu0 1
      %465 = vperm.xlu0 %464, %v286
      %v466 = vpop.permute.xlu0 %465
      %468 = vset.pattern.permute.xlu0 1
      %469 = vperm.xlu0 %468, %v287
      %v470 = vpop.permute.xlu0 %469
      %472 = vset.pattern.permute.xlu0 1
      %473 = vperm.xlu0 %472, %v288
      %v474 = vpop.permute.xlu0 %473
      %v476 = vperm.slane %v346, 1
      %v477 = vmul.f32 %v446, %v476
      %v478 = vmul.f32 %v450, %v476
      %v479 = vmul.f32 %v454, %v476
      %v480 = vmul.f32 %v458, %v476
      %v481 = vmul.f32 %v462, %v476
      %v482 = vmul.f32 %v466, %v476
      %v483 = vmul.f32 %v470, %v476
      %v484 = vmul.f32 %v474, %v476
      %v485 = vadd.f32 %v436, %v477
      %v486 = vadd.f32 %v437, %v478
      %v487 = vadd.f32 %v438, %v479
      %v488 = vadd.f32 %v439, %v480
      %v489 = vadd.f32 %v440, %v481
      %v490 = vadd.f32 %v441, %v482
      %v491 = vadd.f32 %v442, %v483
      %v492 = vadd.f32 %v443, %v484
      %493 = vset.pattern.permute.xlu0 2
      %494 = vperm.xlu0 %493, %v281
      %v495 = vpop.permute.xlu0 %494
      %497 = vset.pattern.permute.xlu0 2
      %498 = vperm.xlu0 %497, %v282
      %v499 = vpop.permute.xlu0 %498
      %501 = vset.pattern.permute.xlu0 2
      %502 = vperm.xlu0 %501, %v283
      %v503 = vpop.permute.xlu0 %502
      %505 = vset.pattern.permute.xlu0 2
      %506 = vperm.xlu0 %505, %v284
      %v507 = vpop.permute.xlu0 %506
      %509 = vset.pattern.permute.xlu0 2
      %510 = vperm.xlu0 %509, %v285
      %v511 = vpop.permute.xlu0 %510
      %513 = vset.pattern.permute.xlu0 2
      %514 = vperm.xlu0 %513, %v286
      %v515 = vpop.permute.xlu0 %514
      %517 = vset.pattern.permute.xlu0 2
      %518 = vperm.xlu0 %517, %v287
      %v519 = vpop.permute.xlu0 %518
      %521 = vset.pattern.permute.xlu0 2
      %522 = vperm.xlu0 %521, %v288
      %v523 = vpop.permute.xlu0 %522
      %v525 = vperm.slane %v346, 2
      %v526 = vmul.f32 %v495, %v525
      %v527 = vmul.f32 %v499, %v525
      %v528 = vmul.f32 %v503, %v525
      %v529 = vmul.f32 %v507, %v525
      %v530 = vmul.f32 %v511, %v525
      %v531 = vmul.f32 %v515, %v525
      %v532 = vmul.f32 %v519, %v525
      %v533 = vmul.f32 %v523, %v525
      %v534 = vadd.f32 %v485, %v526
      %v535 = vadd.f32 %v486, %v527
      %v536 = vadd.f32 %v487, %v528
      %v537 = vadd.f32 %v488, %v529
      %v538 = vadd.f32 %v489, %v530
      %v539 = vadd.f32 %v490, %v531
      %v540 = vadd.f32 %v491, %v532
      %v541 = vadd.f32 %v492, %v533
      %542 = vset.pattern.permute.xlu0 3
      %543 = vperm.xlu0 %542, %v281
      %v544 = vpop.permute.xlu0 %543
      %546 = vset.pattern.permute.xlu0 3
      %547 = vperm.xlu0 %546, %v282
      %v548 = vpop.permute.xlu0 %547
      %550 = vset.pattern.permute.xlu0 3
      %551 = vperm.xlu0 %550, %v283
      %v552 = vpop.permute.xlu0 %551
      %554 = vset.pattern.permute.xlu0 3
      %555 = vperm.xlu0 %554, %v284
      %v556 = vpop.permute.xlu0 %555
      %558 = vset.pattern.permute.xlu0 3
      %559 = vperm.xlu0 %558, %v285
      %v560 = vpop.permute.xlu0 %559
      %562 = vset.pattern.permute.xlu0 3
      %563 = vperm.xlu0 %562, %v286
      %v564 = vpop.permute.xlu0 %563
      %566 = vset.pattern.permute.xlu0 3
      %567 = vperm.xlu0 %566, %v287
      %v568 = vpop.permute.xlu0 %567
      %570 = vset.pattern.permute.xlu0 3
      %571 = vperm.xlu0 %570, %v288
      %v572 = vpop.permute.xlu0 %571
      %v574 = vperm.slane %v346, 3
      %v575 = vmul.f32 %v544, %v574
      %v576 = vmul.f32 %v548, %v574
      %v577 = vmul.f32 %v552, %v574
      %v578 = vmul.f32 %v556, %v574
      %v579 = vmul.f32 %v560, %v574
      %v580 = vmul.f32 %v564, %v574
      %v581 = vmul.f32 %v568, %v574
      %v582 = vmul.f32 %v572, %v574
      %v583 = vadd.f32 %v534, %v575
      %v584 = vadd.f32 %v535, %v576
      %v585 = vadd.f32 %v536, %v577
      %v586 = vadd.f32 %v537, %v578
      %v587 = vadd.f32 %v538, %v579
      %v588 = vadd.f32 %v539, %v580
      %v589 = vadd.f32 %v540, %v581
      %v590 = vadd.f32 %v541, %v582
      %v591 = vmax.f32 %v583, 0.0
      %v592 = vmax.f32 %v584, 0.0
      %v593 = vmax.f32 %v585, 0.0
      %v594 = vmax.f32 %v586, 0.0
      %v595 = vmax.f32 %v587, 0.0
      %v596 = vmax.f32 %v588, 0.0
      %v597 = vmax.f32 %v589, 0.0
      %v598 = vmax.f32 %v590, 0.0
      %600 = vset.pattern.permute.xlu0 0
      %601 = vperm.xlu0 %600, %v313
      %v602 = vpop.permute.xlu0 %601
      %605 = vset.pattern.permute.xlu0 0
      %606 = vperm.xlu0 %605, %v314
      %v607 = vpop.permute.xlu0 %606
      %610 = vset.pattern.permute.xlu0 0
      %611 = vperm.xlu0 %610, %v315
      %v612 = vpop.permute.xlu0 %611
      %615 = vset.pattern.permute.xlu0 0
      %616 = vperm.xlu0 %615, %v316
      %v617 = vpop.permute.xlu0 %616
      %620 = vset.pattern.permute.xlu0 0
      %621 = vperm.xlu0 %620, %v317
      %v622 = vpop.permute.xlu0 %621
      %625 = vset.pattern.permute.xlu0 0
      %626 = vperm.xlu0 %625, %v318
      %v627 = vpop.permute.xlu0 %626
      %630 = vset.pattern.permute.xlu0 0
      %631 = vperm.xlu0 %630, %v319
      %v632 = vpop.permute.xlu0 %631
      %635 = vset.pattern.permute.xlu0 0
      %636 = vperm.xlu0 %635, %v320
      %v637 = vpop.permute.xlu0 %636
      %640 = vset.pattern.permute.xlu0 0
      %641 = vperm.xlu0 %640, %v321
      %v642 = vpop.permute.xlu0 %641
      %645 = vset.pattern.permute.xlu0 0
      %646 = vperm.xlu0 %645, %v322
      %v647 = vpop.permute.xlu0 %646
      %650 = vset.pattern.permute.xlu0 0
      %651 = vperm.xlu0 %650, %v323
      %v652 = vpop.permute.xlu0 %651
      %655 = vset.pattern.permute.xlu0 0
      %656 = vperm.xlu0 %655, %v324
      %v657 = vpop.permute.xlu0 %656
      %660 = vset.pattern.permute.xlu0 0
      %661 = vperm.xlu0 %660, %v325
      %v662 = vpop.permute.xlu0 %661
      %665 = vset.pattern.permute.xlu0 0
      %666 = vperm.xlu0 %665, %v326
      %v667 = vpop.permute.xlu0 %666
      %670 = vset.pattern.permute.xlu0 0
      %671 = vperm.xlu0 %670, %v327
      %v672 = vpop.permute.xlu0 %671
      %675 = vset.pattern.permute.xlu0 0
      %676 = vperm.xlu0 %675, %v328
      %v677 = vpop.permute.xlu0 %676
      %vm679 = vcmask 523264
      %v681 = vsel %vm679, %v297, 0
      %v684 = vsel %vm679, %v298, 0
      %v687 = vsel %vm679, %v299, 0
      %v690 = vsel %vm679, %v300, 0
      %v693 = vsel %vm679, %v301, 0
      %v696 = vsel %vm679, %v302, 0
      %v699 = vsel %vm679, %v303, 0
      %v702 = vsel %vm679, %v304, 0
      %v705 = vsel %vm679, %v305, 0
      %v708 = vsel %vm679, %v306, 0
      %v711 = vsel %vm679, %v307, 0
      %v714 = vsel %vm679, %v308, 0
      %v717 = vsel %vm679, %v309, 0
      %v720 = vsel %vm679, %v310, 0
      %v723 = vsel %vm679, %v311, 0
      %v726 = vsel %vm679, %v312, 0
      %728 = vmatpush.msra.mxu0 0.0
      %729 = vmatpush.msra.mxu0 0.0
      %730 = vmatpush.msra.mxu0 0.0
      %731 = vmatpush.msra.mxu0 0.0
      %732 = vmatpush.msra.mxu0 0.0
      %733 = vmatpush.msra.mxu0 0.0
      %734 = vmatpush.msra.mxu0 0.0
      %735 = vmatpush.msra.mxu0 0.0
      %736 = vmatpush.msra.mxu0 %v598
      %737 = vmatpush.msra.mxu0 %v597
      %738 = vmatpush.msra.mxu0 %v596
      %739 = vmatpush.msra.mxu0 %v595
      %740 = vmatpush.msra.mxu0 %v594
      %741 = vmatpush.msra.mxu0 %v593
      %742 = vmatpush.msra.mxu0 %v592
      %743 = vmatpush.msra.mxu0 %v591
      %744 = vmatmul.f32.gmra.mxu0 %v681
      %v745 = vpop.f32.mrf.mxu0
      %v746 = vadd.f32 %v602, %v745
      %747 = vmatmul.f32.gmra.mxu0 %v684
      %v748 = vpop.f32.mrf.mxu0
      %v749 = vadd.f32 %v607, %v748
      %750 = vmatmul.f32.gmra.mxu0 %v687
      %v751 = vpop.f32.mrf.mxu0
      %v752 = vadd.f32 %v612, %v751
      %753 = vmatmul.f32.gmra.mxu0 %v690
      %v754 = vpop.f32.mrf.mxu0
      %v755 = vadd.f32 %v617, %v754
      %756 = vmatmul.f32.gmra.mxu0 %v693
      %v757 = vpop.f32.mrf.mxu0
      %v758 = vadd.f32 %v622, %v757
      %759 = vmatmul.f32.gmra.mxu0 %v696
      %v760 = vpop.f32.mrf.mxu0
      %v761 = vadd.f32 %v627, %v760
      %762 = vmatmul.f32.gmra.mxu0 %v699
      %v763 = vpop.f32.mrf.mxu0
      %v764 = vadd.f32 %v632, %v763
      %765 = vmatmul.f32.gmra.mxu0 %v702
      %v766 = vpop.f32.mrf.mxu0
      %v767 = vadd.f32 %v637, %v766
      %768 = vmatmul.f32.gmra.mxu0 %v705
      %v769 = vpop.f32.mrf.mxu0
      %v770 = vadd.f32 %v642, %v769
      %771 = vmatmul.f32.gmra.mxu0 %v708
      %v772 = vpop.f32.mrf.mxu0
      %v773 = vadd.f32 %v647, %v772
      %774 = vmatmul.f32.gmra.mxu0 %v711
      %v775 = vpop.f32.mrf.mxu0
      %v776 = vadd.f32 %v652, %v775
      %777 = vmatmul.f32.gmra.mxu0 %v714
      %v778 = vpop.f32.mrf.mxu0
      %v779 = vadd.f32 %v657, %v778
      %780 = vmatmul.f32.gmra.mxu0 %v717
      %v781 = vpop.f32.mrf.mxu0
      %v782 = vadd.f32 %v662, %v781
      %783 = vmatmul.f32.gmra.mxu0 %v720
      %v784 = vpop.f32.mrf.mxu0
      %v785 = vadd.f32 %v667, %v784
      %786 = vmatmul.f32.gmra.mxu0 %v723
      %v787 = vpop.f32.mrf.mxu0
      %v788 = vadd.f32 %v672, %v787
      %789 = vmatmul.f32.gmra.mxu0 %v726
      %v790 = vpop.f32.mrf.mxu0
      %v791 = vadd.f32 %v677, %v790
      %792 = vdwg.mxu0
      %v793 = vmax.f32 %v746, 0.0
      %v794 = vmax.f32 %v749, 0.0
      %v795 = vmax.f32 %v752, 0.0
      %v796 = vmax.f32 %v755, 0.0
      %v797 = vmax.f32 %v758, 0.0
      %v798 = vmax.f32 %v761, 0.0
      %v799 = vmax.f32 %v764, 0.0
      %v800 = vmax.f32 %v767, 0.0
      %v801 = vmax.f32 %v770, 0.0
      %v802 = vmax.f32 %v773, 0.0
      %v803 = vmax.f32 %v776, 0.0
      %v804 = vmax.f32 %v779, 0.0
      %v805 = vmax.f32 %v782, 0.0
      %v806 = vmax.f32 %v785, 0.0
      %v807 = vmax.f32 %v788, 0.0
      %v808 = vmax.f32 %v791, 0.0
      %810 = vset.pattern.permute.xlu0 0
      %811 = vperm.xlu0 %810, %v329
      %v812 = vpop.permute.xlu0 %811
      %815 = vset.pattern.permute.xlu0 0
      %816 = vperm.xlu0 %815, %v330
      %v817 = vpop.permute.xlu0 %816
      %820 = vset.pattern.permute.xlu0 0
      %821 = vperm.xlu0 %820, %v331
      %v822 = vpop.permute.xlu0 %821
      %825 = vset.pattern.permute.xlu0 0
      %826 = vperm.xlu0 %825, %v332
      %v827 = vpop.permute.xlu0 %826
      %830 = vset.pattern.permute.xlu0 0
      %831 = vperm.xlu0 %830, %v333
      %v832 = vpop.permute.xlu0 %831
      %835 = vset.pattern.permute.xlu0 0
      %836 = vperm.xlu0 %835, %v334
      %v837 = vpop.permute.xlu0 %836
      %840 = vset.pattern.permute.xlu0 0
      %841 = vperm.xlu0 %840, %v335
      %v842 = vpop.permute.xlu0 %841
      %845 = vset.pattern.permute.xlu0 0
      %846 = vperm.xlu0 %845, %v336
      %v847 = vpop.permute.xlu0 %846
      %850 = vset.pattern.permute.xlu0 0
      %851 = vperm.xlu0 %850, %v337
      %v852 = vpop.permute.xlu0 %851
      %855 = vset.pattern.permute.xlu0 0
      %856 = vperm.xlu0 %855, %v338
      %v857 = vpop.permute.xlu0 %856
      %860 = vset.pattern.permute.xlu0 0
      %861 = vperm.xlu0 %860, %v339
      %v862 = vpop.permute.xlu0 %861
      %865 = vset.pattern.permute.xlu0 0
      %866 = vperm.xlu0 %865, %v340
      %v867 = vpop.permute.xlu0 %866
      %870 = vset.pattern.permute.xlu0 0
      %871 = vperm.xlu0 %870, %v341
      %v872 = vpop.permute.xlu0 %871
      %875 = vset.pattern.permute.xlu0 0
      %876 = vperm.xlu0 %875, %v342
      %v877 = vpop.permute.xlu0 %876
      %880 = vset.pattern.permute.xlu0 0
      %881 = vperm.xlu0 %880, %v343
      %v882 = vpop.permute.xlu0 %881
      %885 = vset.pattern.permute.xlu0 0
      %886 = vperm.xlu0 %885, %v344
      %v887 = vpop.permute.xlu0 %886
      %v889 = vmul.f32 %v812, %v793
      %v890 = vmul.f32 %v817, %v794
      %v891 = vmul.f32 %v822, %v795
      %v892 = vmul.f32 %v827, %v796
      %v893 = vmul.f32 %v832, %v797
      %v894 = vmul.f32 %v837, %v798
      %v895 = vmul.f32 %v842, %v799
      %v896 = vmul.f32 %v847, %v800
      %v897 = vmul.f32 %v852, %v801
      %v898 = vmul.f32 %v857, %v802
      %v899 = vmul.f32 %v862, %v803
      %v900 = vmul.f32 %v867, %v804
      %v901 = vmul.f32 %v872, %v805
      %v902 = vmul.f32 %v877, %v806
      %v903 = vmul.f32 %v882, %v807
      %v904 = vmul.f32 %v887, %v808
      %v905 = vadd.f32 %v889, %v890
      %v906 = vadd.f32 %v905, %v891
      %v907 = vadd.f32 %v906, %v892
      %v908 = vadd.f32 %v907, %v893
      %v909 = vadd.f32 %v908, %v894
      %v910 = vadd.f32 %v909, %v895
      %v911 = vadd.f32 %v910, %v896
      %v912 = vadd.f32 %v911, %v897
      %v913 = vadd.f32 %v912, %v898
      %v914 = vadd.f32 %v913, %v899
      %v915 = vadd.f32 %v914, %v900
      %v916 = vadd.f32 %v915, %v901
      %v917 = vadd.f32 %v916, %v902
      %v918 = vadd.f32 %v917, %v903
      %v919 = vadd.f32 %v918, %v904
      %v920 = vrot.slane %v919, 4
      %v921 = vadd.f32 %v919, %v920
      %v922 = vrot.slane %v921, 2
      %v923 = vadd.f32 %v921, %v922
      %v924 = vrot.slane %v923, 1
      %v925 = vadd.f32 %v923, %v924
      %v926 = vstv %s345
      %v927 = vadd.f32 %v925, %v926
      %v928 = vlaneseq
      %vm929 = vcmp.ge.s32.totalorder %v928, 0
      %vm930 = vcmp.lt.s32.totalorder %v928, 128
      %vm931 = vmand %vm929, %vm930
      %932 = vst.msk [vmem:[%s279] sm:$0x1] %vm931, %v927
      %s933 = scalar_lea.vmem %s274, 4
      %v934 = vld [vmem:[%s933] sm:$0xf]
      %v935 = vperm.slane %v934, 0
      %v936 = vmul.f32 %v350, %v935
      %v937 = vmul.f32 %v355, %v935
      %v938 = vmul.f32 %v360, %v935
      %v939 = vmul.f32 %v365, %v935
      %v940 = vmul.f32 %v370, %v935
      %v941 = vmul.f32 %v375, %v935
      %v942 = vmul.f32 %v380, %v935
      %v943 = vmul.f32 %v385, %v935
      %v944 = vadd.f32 %v399, %v936
      %v945 = vadd.f32 %v404, %v937
      %v946 = vadd.f32 %v409, %v938
      %v947 = vadd.f32 %v414, %v939
      %v948 = vadd.f32 %v419, %v940
      %v949 = vadd.f32 %v424, %v941
      %v950 = vadd.f32 %v429, %v942
      %v951 = vadd.f32 %v434, %v943
      %v952 = vperm.slane %v934, 1
      %v953 = vmul.f32 %v446, %v952
      %v954 = vmul.f32 %v450, %v952
      %v955 = vmul.f32 %v454, %v952
      %v956 = vmul.f32 %v458, %v952
      %v957 = vmul.f32 %v462, %v952
      %v958 = vmul.f32 %v466, %v952
      %v959 = vmul.f32 %v470, %v952
      %v960 = vmul.f32 %v474, %v952
      %v961 = vadd.f32 %v944, %v953
      %v962 = vadd.f32 %v945, %v954
      %v963 = vadd.f32 %v946, %v955
      %v964 = vadd.f32 %v947, %v956
      %v965 = vadd.f32 %v948, %v957
      %v966 = vadd.f32 %v949, %v958
      %v967 = vadd.f32 %v950, %v959
      %v968 = vadd.f32 %v951, %v960
      %v969 = vperm.slane %v934, 2
      %v970 = vmul.f32 %v495, %v969
      %v971 = vmul.f32 %v499, %v969
      %v972 = vmul.f32 %v503, %v969
      %v973 = vmul.f32 %v507, %v969
      %v974 = vmul.f32 %v511, %v969
      %v975 = vmul.f32 %v515, %v969
      %v976 = vmul.f32 %v519, %v969
      %v977 = vmul.f32 %v523, %v969
      %v978 = vadd.f32 %v961, %v970
      %v979 = vadd.f32 %v962, %v971
      %v980 = vadd.f32 %v963, %v972
      %v981 = vadd.f32 %v964, %v973
      %v982 = vadd.f32 %v965, %v974
      %v983 = vadd.f32 %v966, %v975
      %v984 = vadd.f32 %v967, %v976
      %v985 = vadd.f32 %v968, %v977
      %v986 = vperm.slane %v934, 3
      %v987 = vmul.f32 %v544, %v986
      %v988 = vmul.f32 %v548, %v986
      %v989 = vmul.f32 %v552, %v986
      %v990 = vmul.f32 %v556, %v986
      %v991 = vmul.f32 %v560, %v986
      %v992 = vmul.f32 %v564, %v986
      %v993 = vmul.f32 %v568, %v986
      %v994 = vmul.f32 %v572, %v986
      %v995 = vadd.f32 %v978, %v987
      %v996 = vadd.f32 %v979, %v988
      %v997 = vadd.f32 %v980, %v989
      %v998 = vadd.f32 %v981, %v990
      %v999 = vadd.f32 %v982, %v991
      %v1000 = vadd.f32 %v983, %v992
      %v1001 = vadd.f32 %v984, %v993
      %v1002 = vadd.f32 %v985, %v994
      %v1003 = vmax.f32 %v995, 0.0
      %v1004 = vmax.f32 %v996, 0.0
      %v1005 = vmax.f32 %v997, 0.0
      %v1006 = vmax.f32 %v998, 0.0
      %v1007 = vmax.f32 %v999, 0.0
      %v1008 = vmax.f32 %v1000, 0.0
      %v1009 = vmax.f32 %v1001, 0.0
      %v1010 = vmax.f32 %v1002, 0.0
      %1011 = vmatpush.msra.mxu0 0.0
      %1012 = vmatpush.msra.mxu0 0.0
      %1013 = vmatpush.msra.mxu0 0.0
      %1014 = vmatpush.msra.mxu0 0.0
      %1015 = vmatpush.msra.mxu0 0.0
      %1016 = vmatpush.msra.mxu0 0.0
      %1017 = vmatpush.msra.mxu0 0.0
      %1018 = vmatpush.msra.mxu0 0.0
      %1019 = vmatpush.msra.mxu0 %v1010
      %1020 = vmatpush.msra.mxu0 %v1009
      %1021 = vmatpush.msra.mxu0 %v1008
      %1022 = vmatpush.msra.mxu0 %v1007
      %1023 = vmatpush.msra.mxu0 %v1006
      %1024 = vmatpush.msra.mxu0 %v1005
      %1025 = vmatpush.msra.mxu0 %v1004
      %1026 = vmatpush.msra.mxu0 %v1003
      %1027 = vmatmul.f32.gmra.mxu0 %v681
      %v1028 = vpop.f32.mrf.mxu0
      %v1029 = vadd.f32 %v602, %v1028
      %1030 = vmatmul.f32.gmra.mxu0 %v684
      %v1031 = vpop.f32.mrf.mxu0
      %v1032 = vadd.f32 %v607, %v1031
      %1033 = vmatmul.f32.gmra.mxu0 %v687
      %v1034 = vpop.f32.mrf.mxu0
      %v1035 = vadd.f32 %v612, %v1034
      %1036 = vmatmul.f32.gmra.mxu0 %v690
      %v1037 = vpop.f32.mrf.mxu0
      %v1038 = vadd.f32 %v617, %v1037
      %1039 = vmatmul.f32.gmra.mxu0 %v693
      %v1040 = vpop.f32.mrf.mxu0
      %v1041 = vadd.f32 %v622, %v1040
      %1042 = vmatmul.f32.gmra.mxu0 %v696
      %v1043 = vpop.f32.mrf.mxu0
      %v1044 = vadd.f32 %v627, %v1043
      %1045 = vmatmul.f32.gmra.mxu0 %v699
      %v1046 = vpop.f32.mrf.mxu0
      %v1047 = vadd.f32 %v632, %v1046
      %1048 = vmatmul.f32.gmra.mxu0 %v702
      %v1049 = vpop.f32.mrf.mxu0
      %v1050 = vadd.f32 %v637, %v1049
      %1051 = vmatmul.f32.gmra.mxu0 %v705
      %v1052 = vpop.f32.mrf.mxu0
      %v1053 = vadd.f32 %v642, %v1052
      %1054 = vmatmul.f32.gmra.mxu0 %v708
      %v1055 = vpop.f32.mrf.mxu0
      %v1056 = vadd.f32 %v647, %v1055
      %1057 = vmatmul.f32.gmra.mxu0 %v711
      %v1058 = vpop.f32.mrf.mxu0
      %v1059 = vadd.f32 %v652, %v1058
      %1060 = vmatmul.f32.gmra.mxu0 %v714
      %v1061 = vpop.f32.mrf.mxu0
      %v1062 = vadd.f32 %v657, %v1061
      %1063 = vmatmul.f32.gmra.mxu0 %v717
      %v1064 = vpop.f32.mrf.mxu0
      %v1065 = vadd.f32 %v662, %v1064
      %1066 = vmatmul.f32.gmra.mxu0 %v720
      %v1067 = vpop.f32.mrf.mxu0
      %v1068 = vadd.f32 %v667, %v1067
      %1069 = vmatmul.f32.gmra.mxu0 %v723
      %v1070 = vpop.f32.mrf.mxu0
      %v1071 = vadd.f32 %v672, %v1070
      %1072 = vmatmul.f32.gmra.mxu0 %v726
      %v1073 = vpop.f32.mrf.mxu0
      %v1074 = vadd.f32 %v677, %v1073
      %1075 = vdwg.mxu0
      %v1076 = vmax.f32 %v1029, 0.0
      %v1077 = vmax.f32 %v1032, 0.0
      %v1078 = vmax.f32 %v1035, 0.0
      %v1079 = vmax.f32 %v1038, 0.0
      %v1080 = vmax.f32 %v1041, 0.0
      %v1081 = vmax.f32 %v1044, 0.0
      %v1082 = vmax.f32 %v1047, 0.0
      %v1083 = vmax.f32 %v1050, 0.0
      %v1084 = vmax.f32 %v1053, 0.0
      %v1085 = vmax.f32 %v1056, 0.0
      %v1086 = vmax.f32 %v1059, 0.0
      %v1087 = vmax.f32 %v1062, 0.0
      %v1088 = vmax.f32 %v1065, 0.0
      %v1089 = vmax.f32 %v1068, 0.0
      %v1090 = vmax.f32 %v1071, 0.0
      %v1091 = vmax.f32 %v1074, 0.0
      %v1092 = vmul.f32 %v812, %v1076
      %v1093 = vmul.f32 %v817, %v1077
      %v1094 = vmul.f32 %v822, %v1078
      %v1095 = vmul.f32 %v827, %v1079
      %v1096 = vmul.f32 %v832, %v1080
      %v1097 = vmul.f32 %v837, %v1081
      %v1098 = vmul.f32 %v842, %v1082
      %v1099 = vmul.f32 %v847, %v1083
      %v1100 = vmul.f32 %v852, %v1084
      %v1101 = vmul.f32 %v857, %v1085
      %v1102 = vmul.f32 %v862, %v1086
      %v1103 = vmul.f32 %v867, %v1087
      %v1104 = vmul.f32 %v872, %v1088
      %v1105 = vmul.f32 %v877, %v1089
      %v1106 = vmul.f32 %v882, %v1090
      %v1107 = vmul.f32 %v887, %v1091
      %v1108 = vadd.f32 %v1092, %v1093
      %v1109 = vadd.f32 %v1108, %v1094
      %v1110 = vadd.f32 %v1109, %v1095
      %v1111 = vadd.f32 %v1110, %v1096
      %v1112 = vadd.f32 %v1111, %v1097
      %v1113 = vadd.f32 %v1112, %v1098
      %v1114 = vadd.f32 %v1113, %v1099
      %v1115 = vadd.f32 %v1114, %v1100
      %v1116 = vadd.f32 %v1115, %v1101
      %v1117 = vadd.f32 %v1116, %v1102
      %v1118 = vadd.f32 %v1117, %v1103
      %v1119 = vadd.f32 %v1118, %v1104
      %v1120 = vadd.f32 %v1119, %v1105
      %v1121 = vadd.f32 %v1120, %v1106
      %v1122 = vadd.f32 %v1121, %v1107
      %v1123 = vrot.slane %v1122, 4
      %v1124 = vadd.f32 %v1122, %v1123
      %v1125 = vrot.slane %v1124, 2
      %v1126 = vadd.f32 %v1124, %v1125
      %v1127 = vrot.slane %v1126, 1
      %v1128 = vadd.f32 %v1126, %v1127
      %v1129 = vadd.f32 %v1128, %v926
      %s1130 = scalar_lea.vmem %s279, 1
      %1131 = vst.msk [vmem:[%s1130] sm:$0x1] %vm931, %v1129
      %s1132 = smul.u32 2, %s19
      %p1133 = scmp.lt.s32.totalorder %s1132, 3
      %s1134 = scalar_select %p1133, %s1132, 3
      %s1135 = scalar_lea.vmem %s7, %s1134
      // Predicated region
      $region49: #{_lambda_.1} parent=47 // pred_check
        %p1136 = pneg %p189
      $region50: #{_lambda_.1} parent=47 // pred_check_branch
        %1138 = sbr.rel (%p1136) target = $region52
      $region51: #{_lambda_.1} parent=47 // pred_region
        %s1139 = smul.u32 2, %s19
      $region52: #{_lambda_.1} parent=47 // pred_fallthru
        _
    $region48: #{_lambda_.1} parent=5 // pred_fallthru
      _
    %p1140 = scmp.le.s32.totalorder 2, %s14
    // Predicated region
    $region53: #{_lambda_.1} parent=5 // pred_check
      %p1141 = pneg %p1140
    $region54: #{_lambda_.1} parent=5 // pred_check_branch
      %1143 = sbr.rel (%p1141) target = $region56
    $region55: #{_lambda_.1} parent=5 // pred_region
      %s1144 = ssub.s32 %s14, 2
      // Predicated region
      $region57: #{_lambda_.1} parent=55 // pred_check
        %p1145 = pneg %p195
      $region58: #{_lambda_.1} parent=55 // pred_check_branch
        %1147 = sbr.rel (%p1145) target = $region60
      $region59: #{_lambda_.1} parent=55 // pred_region
        %s1148 = smul.u32 2, %s20
        %p1149 = scmp.lt.s32.totalorder %s1148, 3
        %s1150 = scalar_select %p1149, %s1148, 3
        %s1151 = scalar_lea.vmem %s7, %s1150
      $region60: #{_lambda_.1} parent=55 // pred_fallthru
        _
    $region56: #{_lambda_.1} parent=5 // pred_fallthru
      _
  $region6: #{_lambda_.1} parent=0 // loop_footer
    %s18 = sadd.s32 1, %s14
  $region7: #{_lambda_.1} parent=0 // loop_footer_branch
    %13 = sbr.rel target = $region3
  $region8: #{_lambda_.1} parent=0 // loop_exit
    _

</llo_original>
